<compile_context>
chip_gen: v7x
topology: tpu7x:2x2x1
jax: 0.10.0
libtpu: 0.0.40
codegen_flags: <defaults>
</compile_context>

<pallas_src>
import jax
import jax.numpy as jnp
from jax.experimental import pallas as pl
from jax.experimental.pallas import tpu as pltpu
from typing import NamedTuple


# ---------------------------------------------------------------------------
# Kernels
# ---------------------------------------------------------------------------
def _hidden_layer_kernel_fullk(x_ref, w_ref, b_ref, o_ref):
    # x_ref: (tile_m, Kp)  w_ref: (Kp, tile_n)  b_ref: (1, tile_n)
    # Full-K block: no accumulator scratch, no init/finalize branches.
    acc = jnp.dot(x_ref[...].astype(w_ref.dtype), w_ref[...],
                  preferred_element_type=jnp.float32)
    o_ref[...] = jnp.maximum(acc + b_ref[...], 0.0).astype(o_ref.dtype)


def _hidden_layer_kernel_ktiled(x_ref, w_ref, b_ref, o_ref, acc_ref):
    # Fallback when full K does not fit VMEM: K is the innermost "arbitrary"
    # grid axis feeding an f32 accumulator.
    k = pl.program_id(2)

    @pl.when(k == 0)
    def _():
        acc_ref[...] = jnp.zeros_like(acc_ref)

    acc_ref[...] += jnp.dot(x_ref[...].astype(w_ref.dtype), w_ref[...],
                            preferred_element_type=jnp.float32)

    @pl.when(k == pl.num_programs(2) - 1)
    def _():
        o_ref[...] = jnp.maximum(acc_ref[...] + b_ref[...], 0.0).astype(o_ref.dtype)


# ---------------------------------------------------------------------------
# Parameter preparation (one-time, at model-load time — NOT per call)
# ---------------------------------------------------------------------------
class HiddenLayerParams(NamedTuple):
    w_kn: jax.Array        # (Kp, Np) weight, (in, out) layout, padded, compute dtype
    bias: jax.Array        # (1, Np) float32, padded
    in_features: int
    out_features: int


def _round_up(x, m):
    return ((x + m - 1) // m) * m


def prepare_params(weight, bias, *, compute_dtype=jnp.float32):
    """Pad feature dims to 128-multiples, transpose weight (out,in)->(in,out)
    and cast to the compute dtype.  Call once; reuse the result every forward.
    """
    out_f, in_f = weight.shape
    Kp = _round_up(in_f, 128)
    Np = _round_up(out_f, 128)

    w = jnp.asarray(weight, jnp.float32)
    if (Np, Kp) != (out_f, in_f):
        w = jnp.pad(w, ((0, Np - out_f), (0, Kp - in_f)))
    w_kn = jnp.asarray(w.T, compute_dtype)            # canonical (K, N) layout

    b = jnp.asarray(bias, jnp.float32)
    if Np != out_f:
        b = jnp.pad(b, (0, Np - out_f))
    return HiddenLayerParams(w_kn=w_kn, bias=b.reshape(1, Np),
                             in_features=in_f, out_features=out_f)


# ---------------------------------------------------------------------------
# Tile selection helpers
# ---------------------------------------------------------------------------
def _largest_tile(total, cap):
    """Largest multiple of 128 that divides `total` (a 128-multiple) and <= cap."""
    cap = max(128, min(cap, total))
    start = (cap // 128) * 128
    for t in range(start, 127, -128):
        if total % t == 0:
            return t
    return 128


def _working_set_bytes(tile_m, tile_n, tile_k, x_bytes, w_bytes, out_bytes, k_tiled):
    ws = 2 * tile_m * tile_k * x_bytes      # x tile, double-buffered
    ws += 2 * tile_k * tile_n * w_bytes     # weight tile, double-buffered
    ws += 2 * 1 * tile_n * 4                # bias tile
    ws += 2 * tile_m * tile_n * out_bytes   # output tile
    if k_tiled:
        ws += tile_m * tile_n * 4           # f32 accumulator scratch
    return ws


# ---------------------------------------------------------------------------
# Forward pass
# ---------------------------------------------------------------------------
def hidden_layer(x, params: HiddenLayerParams, *, tile_m=None, tile_n=None,
                 tile_k=None, vmem_budget_bytes=40 * 1024 * 1024):
    """ReLU(x @ weight.T + bias), matching torch.nn.Linear + ReLU.

    x:      (B, in_features) float32
    params: HiddenLayerParams from prepare_params(weight, bias)
    """
    B, in_f = x.shape
    assert in_f == params.in_features, "in_features mismatch"
    Kp, Np = params.w_kn.shape
    out_f = params.out_features

    # --- tile selection -----------------------------------------------------
    if tile_m is None:
        tile_m = min(_round_up(B, 8), 512)
    Bp = _round_up(B, tile_m)

    if tile_n is None:
        tile_n = _largest_tile(Np, 512)
        # v7x megacore: ensure >= 2 blocks on a parallel axis when possible.
        if Bp // tile_m == 1 and Np // tile_n == 1 and Np >= 256:
            tile_n = _largest_tile(Np, Np // 2)

    x_bytes = jnp.dtype(x.dtype).itemsize
    w_bytes = jnp.dtype(params.w_kn.dtype).itemsize
    o_bytes = jnp.dtype(x.dtype).itemsize

    if tile_k is None:
        tile_k = 128
        for t in range(Kp, 127, -128):          # Kp, Kp-128, ..., 128 (divisors only)
            if Kp % t:
                continue
            if _working_set_bytes(tile_m, tile_n, t, x_bytes, w_bytes, o_bytes,
                                  t != Kp) <= vmem_budget_bytes:
                tile_k = t
                break

    # --- per-call activation padding (params are pre-padded) ----------------
    if (Bp, Kp) != (B, in_f):
        x_p = jnp.pad(x, ((0, Bp - B), (0, Kp - in_f)))
    else:
        x_p = x

    ws = _working_set_bytes(tile_m, tile_n, tile_k, x_bytes, w_bytes, o_bytes,
                            tile_k != Kp)
    # Raise scoped VMEM to fit the tiles; cap at 48 MiB for v7x (64 MiB/TC).
    vmem_limit = int(min(max(ws + (8 << 20), 32 << 20), 48 << 20))

    if tile_k == Kp:
        # Full-K block: 2-D grid, direct store, no scratch.
        out_p = pl.pallas_call(
            _hidden_layer_kernel_fullk,
            out_shape=jax.ShapeDtypeStruct((Bp, Np), x.dtype),
            grid_spec=pltpu.PrefetchScalarGridSpec(
                num_scalar_prefetch=0,
                grid=(Bp // tile_m, Np // tile_n),
                in_specs=[
                    pl.BlockSpec((tile_m, Kp), lambda i, j: (i, 0)),
                    pl.BlockSpec((Kp, tile_n), lambda i, j: (0, j)),
                    pl.BlockSpec((1, tile_n), lambda i, j: (0, j)),
                ],
                out_specs=pl.BlockSpec((tile_m, tile_n), lambda i, j: (i, j)),
            ),
            compiler_params=pltpu.CompilerParams(
                dimension_semantics=("parallel", "parallel"),
                vmem_limit_bytes=vmem_limit),
        )(x_p, params.w_kn, params.bias)
    else:
        # K-tiled fallback with f32 accumulator (K innermost, "arbitrary").
        out_p = pl.pallas_call(
            _hidden_layer_kernel_ktiled,
            out_shape=jax.ShapeDtypeStruct((Bp, Np), x.dtype),
            grid_spec=pltpu.PrefetchScalarGridSpec(
                num_scalar_prefetch=0,
                grid=(Bp // tile_m, Np // tile_n, Kp // tile_k),
                in_specs=[
                    pl.BlockSpec((tile_m, tile_k), lambda i, j, k: (i, k)),
                    pl.BlockSpec((tile_k, tile_n), lambda i, j, k: (k, j)),
                    pl.BlockSpec((1, tile_n), lambda i, j, k: (0, j)),
                ],
                out_specs=pl.BlockSpec((tile_m, tile_n), lambda i, j, k: (i, j)),
                scratch_shapes=[pltpu.VMEM((tile_m, tile_n), jnp.float32)],
            ),
            compiler_params=pltpu.CompilerParams(
                dimension_semantics=("parallel", "parallel", "arbitrary"),
                vmem_limit_bytes=vmem_limit),
        )(x_p, params.w_kn, params.bias)

    if (Bp, Np) != (B, out_f):
        out_p = out_p[:B, :out_f]
    return out_p


# ---------------------------------------------------------------------------
if __name__ == "__main__":
    key = jax.random.PRNGKey(0)
    kx, kw, kb, kx2, kw2, kb2 = jax.random.split(key, 6)

    # Small shapes consistent with the module (input_size=32, output_size=32).
    B, IN, OUT = 8, 32, 32
    x = jax.random.normal(kx, (B, IN), dtype=jnp.float32)
    bound = 1.0 / (IN ** 0.5)
    weight = jax.random.uniform(kw, (OUT, IN), minval=-bound, maxval=bound,
                                dtype=jnp.float32)
    bias = jax.random.uniform(kb, (OUT,), minval=-bound, maxval=bound,
                              dtype=jnp.float32)

    params = prepare_params(weight, bias)                   # one-time prep
    y = hidden_layer(x, params)
    jax.block_until_ready(y)
    y_ref = jnp.maximum(x @ weight.T + bias, 0.0)
    assert y.shape == y_ref.shape, "shape mismatch vs reference"
    assert jnp.allclose(y, y_ref, atol=1e-5, rtol=1e-5), "f32 mismatch vs reference"

    # Ragged / non-128-aligned shapes exercise the padding paths.
    B2, IN2, OUT2 = 5, 50, 20
    x2 = jax.random.normal(kx2, (B2, IN2), dtype=jnp.float32)
    bound2 = 1.0 / (IN2 ** 0.5)
    w2 = jax.random.uniform(kw2, (OUT2, IN2), minval=-bound2, maxval=bound2,
                            dtype=jnp.float32)
    b2 = jax.random.uniform(kb2, (OUT2,), minval=-bound2, maxval=bound2,
                            dtype=jnp.float32)
    p2 = prepare_params(w2, b2)
    y2 = hidden_layer(x2, p2)
    jax.block_until_ready(y2)
    y2_ref = jnp.maximum(x2 @ w2.T + b2, 0.0)
    assert jnp.allclose(y2, y2_ref, atol=1e-5, rtol=1e-5), "ragged f32 mismatch"

    # Optional bf16-operand MXU path (f32 accumulation); loose tolerance.
    p_bf16 = prepare_params(weight, bias, compute_dtype=jnp.bfloat16)
    y_bf16 = hidden_layer(x, p_bf16)
    jax.block_until_ready(y_bf16)
    assert jnp.allclose(y_bf16, y_ref, atol=1e-1, rtol=1e-1), "bf16 path mismatch"

    print("KERNEL_OK")
</pallas_src>

<mosaic_0001>
module attributes {stable_mosaic.version = 11 : i64} {
  func.func @_hidden_layer_kernel_fullk(%arg0: i32, %arg1: i32, %arg2: memref<8x128xf32, #tpu.memory_space<vmem>>, %arg3: memref<128x128xf32, #tpu.memory_space<vmem>>, %arg4: memref<1x128xf32, #tpu.memory_space<vmem>>, %arg5: memref<8x128xf32, #tpu.memory_space<vmem>>) attributes {dimension_semantics = [#tpu.dimension_semantics<parallel>, #tpu.dimension_semantics<parallel>], iteration_bounds = array<i64: 1, 1>, scalar_prefetch = 0 : i64, scratch_operands = 0 : i64, tpu.core_type = #tpu.core_type<tc>, window_params = [{transform_indices = @transform_0, window_bounds = array<i64: 8, 128>}, {transform_indices = @transform_1, window_bounds = array<i64: 128, 128>}, {transform_indices = @transform_2, window_bounds = array<i64: 1, 128>}, {transform_indices = @transform_3, window_bounds = array<i64: 8, 128>}]} {
    %c0 = arith.constant 0 : index
    %c0_0 = arith.constant 0 : index
    %0 = vector.load %arg2[%c0, %c0_0] : memref<8x128xf32, #tpu.memory_space<vmem>>, vector<8x128xf32>
    %c0_1 = arith.constant 0 : index
    %c0_2 = arith.constant 0 : index
    %1 = vector.load %arg3[%c0_1, %c0_2] : memref<128x128xf32, #tpu.memory_space<vmem>>, vector<128x128xf32>
    %cst = arith.constant dense<0.000000e+00> : vector<8x128xf32>
    %2 = tpu.matmul %0, %1, %cst {dimension_numbers = #tpu.dot_dimension_numbers<[1], [0], [0], [1], [0, 0, 1, 1], [], []>} : vector<8x128xf32>, vector<128x128xf32>, vector<8x128xf32> -> vector<8x128xf32>
    %c0_3 = arith.constant 0 : index
    %c0_4 = arith.constant 0 : index
    %3 = vector.load %arg4[%c0_3, %c0_4] : memref<1x128xf32, #tpu.memory_space<vmem>>, vector<1x128xf32>
    %4 = vector.broadcast %3 : vector<1x128xf32> to vector<8x128xf32>
    %5 = arith.addf %2, %4 : vector<8x128xf32>
    %cst_5 = arith.constant 0.000000e+00 : f32
    %6 = vector.broadcast %cst_5 : f32 to vector<8x128xf32>
    %7 = arith.maximumf %5, %6 : vector<8x128xf32>
    %c0_6 = arith.constant 0 : index
    %c0_7 = arith.constant 0 : index
    %8 = vector.load %arg5[%c0_6, %c0_7] : memref<8x128xf32, #tpu.memory_space<vmem>>, vector<8x128xf32>
    tpu.vector_store %arg5[%c0_6, %c0_7], %7 {strides = array<i32>} : memref<8x128xf32, #tpu.memory_space<vmem>>, vector<8x128xf32>,
    return
  }
  func.func @transform_0(%arg0: i32, %arg1: i32) -> (i32, i32) {
    %c0_i32 = arith.constant 0 : i32
    %c0_i32_0 = arith.constant 0 : i32
    return %arg0, %c0_i32 : i32, i32
  }
  func.func @transform_1(%arg0: i32, %arg1: i32) -> (i32, i32) {
    %c0_i32 = arith.constant 0 : i32
    %c0_i32_0 = arith.constant 0 : i32
    return %c0_i32, %arg1 : i32, i32
  }
  func.func @transform_2(%arg0: i32, %arg1: i32) -> (i32, i32) {
    %c0_i32 = arith.constant 0 : i32
    %c0_i32_0 = arith.constant 0 : i32
    return %c0_i32, %arg1 : i32, i32
  }
  func.func @transform_3(%arg0: i32, %arg1: i32) -> (i32, i32) {
    %c0_i32 = arith.constant 0 : i32
    return %arg0, %arg1 : i32, i32
  }
}

</mosaic_0001>

<llo_original>
// kernel: tpu_custom_call.1
$region0: #{tpu_custom_call.1}
  #allocation0 [shape = 'u32[]', space=smem, size = 0x4, offset = 0x4, fixed_abs, tag = 'smem constant byte address 0x4 - core index']
  #allocation1 [shape = 'u32[144,128]{1,0:T(1,128)}', space=vmem, size = 0x12000, scoped, tag = 'internal scratch']
  %s0 = inlined_call_operand.hbm [shape: f32[8,128], index: 0, kind: input, shape index: {}]
  %s1 = inlined_call_operand.hbm [shape: f32[128,128], index: 1, kind: input, shape index: {}]
  %s2 = inlined_call_operand.vmem [shape: f32[1,128], index: 2, kind: input, shape index: {}]
  %s3 = inlined_call_operand.hbm [shape: f32[8,128], index: 3, kind: output, shape index: {}]
  %s4 = sld [smem:[#allocation0]]
  $region30: #{tpu_custom_call.1} parent=0
    _
  %s6 = ssub.s32 1, %s4
  %s7 = scalar_select 0, %s6, %s4
  $region1: #{tpu_custom_call.1} parent=0
    #allocation2 [shape = 'u8[4096]{0}', space=vmem, size = 0x1000, scoped, tag = 'input window, operand 0, single buffered']
    #allocation3 [shape = 's32[1]{0}', space=sflag, size = 0x4, scoped, tag = 'scoped memory for tpu_custom_call.1']
    #allocation4 [shape = 's32[1]{0}', space=sflag, size = 0x4, scoped, tag = 'scoped memory for tpu_custom_call.1']
    #allocation5 [shape = 'u8[65536]{0}', space=vmem, size = 0x10000, scoped, tag = 'input window, operand 1, single buffered']
    #allocation6 [shape = 's32[1]{0}', space=sflag, size = 0x4, scoped, tag = 'scoped memory for tpu_custom_call.1']
    #allocation7 [shape = 'u8[4096]{0}', space=vmem, size = 0x1000, scoped, tag = 'output window, operand 0, single buffered']
    %8 = vsyncpa [#allocation3], 0
    %9 = vsyncpa [#allocation6], 0
    %10 = vsyncpa [#allocation4], 0
    // Predicated region
    $region2: #{tpu_custom_call.1} parent=1 // pred_check
      _
    $region3: #{tpu_custom_call.1} parent=1 // pred_check_branch
      %12 = sbr.rel (0) target = $region5
    $region4: #{tpu_custom_call.1} parent=1 // pred_region
      %s14 = ssub.s32 128, 128
      %15 = vsyncadd [#allocation3], %s14
      %s17 = sshll.u32 [#allocation2], 4
      %s18 = int_to_ptr.vmem [resolvable:$true] %s17
      %20 = dma.hbm_to_vmem [thread:$0]  %s0, 128, %s18, [#allocation3]
    $region5: #{tpu_custom_call.1} parent=1 // pred_fallthru
      _
    // Predicated region
    $region6: #{tpu_custom_call.1} parent=1 // pred_check
      _
    $region7: #{tpu_custom_call.1} parent=1 // pred_check_branch
      %22 = sbr.rel (0) target = $region9
    $region8: #{tpu_custom_call.1} parent=1 // pred_region
      %s24 = ssub.s32 2048, 2048
      %25 = vsyncadd [#allocation6], %s24
      %s26 = sshll.u32 [#allocation5], 4
      %s27 = int_to_ptr.vmem [resolvable:$true] %s26
      %32 = dma.hbm_to_vmem [thread:$0]  %s1, 2048, %s27, [#allocation6], 128, 128, 8
    $region9: #{tpu_custom_call.1} parent=1 // pred_fallthru
      _
    // Predicated region
    $region10: #{tpu_custom_call.1} parent=1 // pred_check
      _
    $region11: #{tpu_custom_call.1} parent=1 // pred_check_branch
      %34 = sbr.rel (0) target = $region13
    $region12: #{tpu_custom_call.1} parent=1 // pred_region
      _
    $region13: #{tpu_custom_call.1} parent=1 // pred_fallthru
      _
    // Predicated region
    $region14: #{tpu_custom_call.1} parent=1 // pred_check
      _
    $region15: #{tpu_custom_call.1} parent=1 // pred_check_branch
      %36 = sbr.rel (0) target = $region17
    $region16: #{tpu_custom_call.1} parent=1 // pred_region
      %37 = dma.done [#allocation3], 128
    $region17: #{tpu_custom_call.1} parent=1 // pred_fallthru
      _
    // Predicated region
    $region18: #{tpu_custom_call.1} parent=1 // pred_check
      _
    $region19: #{tpu_custom_call.1} parent=1 // pred_check_branch
      %39 = sbr.rel (0) target = $region21
    $region20: #{tpu_custom_call.1} parent=1 // pred_region
      %40 = dma.done [#allocation6], 2048
    $region21: #{tpu_custom_call.1} parent=1 // pred_fallthru
      _
    %v41 = vld [vmem:[#allocation2] sm:$0xff]
    %v42 = vld [vmem:[#allocation5] sm:$0xff]
    %v43 = vld [vmem:[#allocation5 + $0x8] sm:$0xff]
    %v44 = vld [vmem:[#allocation5 + $0x10] sm:$0xff]
    %v45 = vld [vmem:[#allocation5 + $0x18] sm:$0xff]
    %v46 = vld [vmem:[#allocation5 + $0x20] sm:$0xff]
    %v47 = vld [vmem:[#allocation5 + $0x28] sm:$0xff]
    %v48 = vld [vmem:[#allocation5 + $0x30] sm:$0xff]
    %v49 = vld [vmem:[#allocation5 + $0x38] sm:$0xff]
    %v50 = vld [vmem:[#allocation5 + $0x40] sm:$0xff]
    %v51 = vld [vmem:[#allocation5 + $0x48] sm:$0xff]
    %v52 = vld [vmem:[#allocation5 + $0x50] sm:$0xff]
    %v53 = vld [vmem:[#allocation5 + $0x58] sm:$0xff]
    %v54 = vld [vmem:[#allocation5 + $0x60] sm:$0xff]
    %v55 = vld [vmem:[#allocation5 + $0x68] sm:$0xff]
    %v56 = vld [vmem:[#allocation5 + $0x70] sm:$0xff]
    %v57 = vld [vmem:[#allocation5 + $0x78] sm:$0xff]
    %v58 = vld [vmem:[%s2] sm:$0x1]
    %v60 = vlaneseq
    %v61 = vshrl.u32 %v60, 7
    %v62 = vsub.s32 0, %v61
    %v63 = vrot.slane %v58, %v62
    %65 = vmatprep.subr.mxu0 0.0
    %66 = vmatpush1.msra.mxu0 %v42
    %67 = vmatprep.subr.mxu0 0.0
    %68 = vmatpush1.msra.mxu0 %v43
    %69 = vmatprep.subr.mxu0 0.0
    %70 = vmatpush1.msra.mxu0 %v44
    %71 = vmatprep.subr.mxu0 0.0
    %72 = vmatpush1.msra.mxu0 %v45
    %73 = vmatprep.subr.mxu0 0.0
    %74 = vmatpush1.msra.mxu0 %v46
    %75 = vmatprep.subr.mxu0 0.0
    %76 = vmatpush1.msra.mxu0 %v47
    %77 = vmatprep.subr.mxu0 0.0
    %78 = vmatpush1.msra.mxu0 %v48
    %79 = vmatprep.subr.mxu0 0.0
    %80 = vmatpush1.msra.mxu0 %v49
    %81 = vmatprep.subr.mxu0 0.0
    %82 = vmatpush1.msra.mxu0 %v50
    %83 = vmatprep.subr.mxu0 0.0
    %84 = vmatpush1.msra.mxu0 %v51
    %85 = vmatprep.subr.mxu0 0.0
    %86 = vmatpush1.msra.mxu0 %v52
    %87 = vmatprep.subr.mxu0 0.0
    %88 = vmatpush1.msra.mxu0 %v53
    %89 = vmatprep.subr.mxu0 0.0
    %90 = vmatpush1.msra.mxu0 %v54
    %91 = vmatprep.subr.mxu0 0.0
    %92 = vmatpush1.msra.mxu0 %v55
    %93 = vmatprep.subr.mxu0 0.0
    %94 = vmatpush1.msra.mxu0 %v56
    %95 = vmatprep.subr.mxu0 0.0
    %96 = vmatpush1.msra.mxu0 %v57
    %97 = vmatprep.subr.mxu0 0.0
    %98 = vmatpush1.msra.mxu0 0.0
    %99 = vmatprep.subr.mxu0 0.0
    %100 = vmatpush1.msra.mxu0 0.0
    %101 = vmatprep.subr.mxu0 0.0
    %102 = vmatpush1.msra.mxu0 0.0
    %103 = vmatprep.subr.mxu0 0.0
    %104 = vmatpush1.msra.mxu0 0.0
    %105 = vmatprep.subr.mxu0 0.0
    %106 = vmatpush1.msra.mxu0 0.0
    %107 = vmatprep.subr.mxu0 0.0
    %108 = vmatpush1.msra.mxu0 0.0
    %109 = vmatprep.subr.mxu0 0.0
    %110 = vmatpush1.msra.mxu0 0.0
    %111 = vmatprep.subr.mxu0 0.0
    %112 = vmatpush1.msra.mxu0 0.0
    %113 = vmatprep.subr.mxu0 0.0
    %114 = vmatpush1.msra.mxu0 0.0
    %115 = vmatprep.subr.mxu0 0.0
    %116 = vmatpush1.msra.mxu0 0.0
    %117 = vmatprep.subr.mxu0 0.0
    %118 = vmatpush1.msra.mxu0 0.0
    %119 = vmatprep.subr.mxu0 0.0
    %120 = vmatpush1.msra.mxu0 0.0
    %121 = vmatprep.subr.mxu0 0.0
    %122 = vmatpush1.msra.mxu0 0.0
    %123 = vmatprep.subr.mxu0 0.0
    %124 = vmatpush1.msra.mxu0 0.0
    %125 = vmatprep.subr.mxu0 0.0
    %126 = vmatpush1.msra.mxu0 0.0
    %127 = vmatprep.subr.mxu0 0.0
    %128 = vmatpush1.msra.mxu0 0.0
    %129 = vmatprep.mubr.f32.mxu0 0.0
    %130 = vmatmul.mubr.f32.gmra.mrb[0].mxu0 %v41
    %v131 = vpop.f32.mrb[0].mxu0
    %v132 = vadd.f32 %v63, %v131
    %v133 = vpop.f32.mrb[0].mxu0
    %134 = vdwg.mxu0
    %v135 = vmax.f32 %v132, 0.0
    %136 = vst [vmem:[#allocation7] sm:$0xff] %v135
    // Predicated region
    $region22: #{tpu_custom_call.1} parent=1 // pred_check
      _
    $region23: #{tpu_custom_call.1} parent=1 // pred_check_branch
      %138 = sbr.rel (0) target = $region25
    $region24: #{tpu_custom_call.1} parent=1 // pred_region
      %s140 = ssub.s32 128, 128
      %141 = vsyncadd [#allocation4], %s140
      %s143 = sshll.u32 [#allocation7], 4
      %s144 = int_to_ptr.vmem [resolvable:$true] %s143
      %146 = dma.vmem_to_hbm [thread:$0]  %s144, 128, %s3, [#allocation4]
    $region25: #{tpu_custom_call.1} parent=1 // pred_fallthru
      _
    // Predicated region
    $region26: #{tpu_custom_call.1} parent=1 // pred_check
      _
    $region27: #{tpu_custom_call.1} parent=1 // pred_check_branch
      %148 = sbr.rel (0) target = $region29
    $region28: #{tpu_custom_call.1} parent=1 // pred_region
      %149 = dma.done [#allocation4], 128
    $region29: #{tpu_custom_call.1} parent=1 // pred_fallthru
      _
    %150 = vsyncpa [#allocation3], 1
    %151 = vsyncpa [#allocation6], 1
    %152 = vsyncpa [#allocation4], 1

</llo_original>
